<compile_context>
chip_gen: v7x
topology: tpu7x:2x2x1
jax: 0.10.0
libtpu: 0.0.40
codegen_flags: <defaults>
</compile_context>

<pallas_src>
import functools

import jax
import jax.numpy as jnp
from jax.experimental import pallas as pl
from jax.experimental.pallas import tpu as pltpu

LANE = 128
MAX_BLOCK_ROWS = 2048      # 2048 x 128 x 4 B = 1 MiB per f32 input block
NUM_CORE_SPLITS = 2        # leading "parallel" grid axis (both TCs on v7x)


def _round_up(x, m):
    return ((x + m - 1) // m) * m


def _as_slab(x, rows_pad):
    """Row-major flatten to (rows_pad, LANE) in the array's native dtype."""
    flat = x.reshape(-1)
    pad = rows_pad * LANE - flat.shape[0]
    if pad:
        flat = jnp.pad(flat, (0, pad))
    return flat.reshape(rows_pad, LANE)


@functools.partial(jax.jit, static_argnames=("scale",))
def l1_bce_loss(pred0, pred1, target_dists, prob, scale=(1.0, 1.0)):
    assert pred0.shape == pred1.shape == target_dists.shape == prob.shape
    n = pred0.size

    rows = pl.cdiv(n, LANE)
    rows_pad = _round_up(rows, 8)          # sublane-align the slab

    a0 = _as_slab(pred0, rows_pad)
    a1 = _as_slab(pred1, rows_pad)
    at = _as_slab(target_dists, rows_pad)
    ap = _as_slab(prob, rows_pad)

    block_rows = min(MAX_BLOCK_ROWS, rows_pad)            # multiple of 8
    total_blocks = pl.cdiv(rows_pad, block_rows)
    num_splits = min(NUM_CORE_SPLITS, total_blocks)
    blocks_per_split = pl.cdiv(total_blocks, num_splits)
    # Static: does the last block overrun the slab (garbage rows to mask)?
    ragged = (rows_pad % block_rows) != 0

    def kernel(p0_ref, p1_ref, t_ref, w_ref, out_ref, acc_l1, acc_bce):
        j = pl.program_id(0)   # parallel split (core) index
        i = pl.program_id(1)   # reduction step within this split
        block_idx = j * blocks_per_split + i

        @pl.when(i == 0)
        def _():
            acc_l1[...] = jnp.zeros_like(acc_l1)
            acc_bce[...] = jnp.zeros_like(acc_bce)

        # Skip duplicated (index-map clamped) tail iterations entirely.
        @pl.when(block_idx < total_blocks)
        def _():
            p0 = p0_ref[...].astype(jnp.float32)
            p1 = p1_ref[...].astype(jnp.float32)
            t = t_ref[...].astype(jnp.float32)
            w = w_ref[...].astype(jnp.float32)

            # weighted L1: prob * |pred0 - target|
            l1_term = w * jnp.abs(p0 - t)

            # BCE with PyTorch's log clamp at -100 (F.binary_cross_entropy)
            log_p = jnp.maximum(jnp.log(p1), jnp.float32(-100.0))
            log_1mp = jnp.maximum(jnp.log(1.0 - p1), jnp.float32(-100.0))
            bce_term = -(w * log_p + (1.0 - w) * log_1mp)

            if ragged:
                # Only the ragged last block can contain garbage rows beyond
                # the slab; zero-padded rows inside the slab contribute 0.
                row_ids = block_idx * block_rows + jax.lax.broadcasted_iota(
                    jnp.int32, (block_rows, LANE), 0)
                valid = row_ids < rows_pad
                l1_term = jnp.where(valid, l1_term, 0.0)
                bce_term = jnp.where(valid, bce_term, 0.0)

            acc_l1[...] += l1_term
            acc_bce[...] += bce_term

        @pl.when(i == pl.num_programs(1) - 1)
        def _():
            out_ref[0, 0] = jnp.sum(acc_l1[...])
            out_ref[0, 1] = jnp.sum(acc_bce[...])

    def in_map(j, i):
        # Clamp so duplicated tail iterations stay in-bounds (they are skipped
        # by the in-kernel scalar guard).
        return (jnp.minimum(j * blocks_per_split + i, total_blocks - 1), 0)

    vmem_spec = pl.BlockSpec((block_rows, LANE), in_map)
    out_spec = pl.BlockSpec((1, 2), lambda j, i: (j, 0),
                            memory_space=pltpu.MemorySpace.SMEM)

    partials = pl.pallas_call(
        kernel,
        out_shape=jax.ShapeDtypeStruct((num_splits, 2), jnp.float32),
        grid_spec=pltpu.PrefetchScalarGridSpec(
            num_scalar_prefetch=0,
            grid=(num_splits, blocks_per_split),
            in_specs=[vmem_spec, vmem_spec, vmem_spec, vmem_spec],
            out_specs=out_spec,
            scratch_shapes=[pltpu.VMEM((block_rows, LANE), jnp.float32),
                            pltpu.VMEM((block_rows, LANE), jnp.float32)],
        ),
        compiler_params=pltpu.CompilerParams(
            dimension_semantics=("parallel", "arbitrary"),
            vmem_limit_bytes=32 * 1024 * 1024),
    )(a0, a1, at, ap)

    inv_n = jnp.float32(1.0 / n)
    l1loss = jnp.sum(partials[:, 0]) * inv_n
    bceloss = jnp.sum(partials[:, 1]) * inv_n
    total = jnp.float32(scale[0]) * l1loss + jnp.float32(scale[1]) * bceloss
    return total, l1loss, bceloss


def _reference(pred0, pred1, target_dists, prob, scale=(1.0, 1.0)):
    p0 = pred0.astype(jnp.float32)
    p1 = pred1.astype(jnp.float32)
    t = target_dists.astype(jnp.float32)
    w = prob.astype(jnp.float32)
    l1 = jnp.mean(w * jnp.abs(p0 - t))
    log_p = jnp.maximum(jnp.log(p1), -100.0)
    log_1mp = jnp.maximum(jnp.log(1.0 - p1), -100.0)
    bce = jnp.mean(-(w * log_p + (1.0 - w) * log_1mp))
    return scale[0] * l1 + scale[1] * bce, l1, bce


def _make_inputs(key, shape):
    k0, k1, k2, k3 = jax.random.split(key, 4)
    pred0 = jax.random.normal(k0, shape, dtype=jnp.float32)            # distances
    pred1 = jax.nn.sigmoid(jax.random.normal(k1, shape, jnp.float32))  # probs in (0,1)
    target = jax.random.normal(k2, shape, dtype=jnp.float32)
    prob = jax.random.uniform(k3, shape, dtype=jnp.float32)            # BCE targets
    return pred0, pred1, target, prob


def _check(shape, key, rtol, atol, scale=(1.0, 1.0)):
    pred0, pred1, target, prob = _make_inputs(key, shape)
    total, l1loss, bceloss = l1_bce_loss(pred0, pred1, target, prob, scale=scale)
    jax.block_until_ready((total, l1loss, bceloss))
    ref_total, ref_l1, ref_bce = _reference(pred0, pred1, target, prob, scale)
    assert jnp.allclose(total, ref_total, rtol=rtol, atol=atol), (shape, total, ref_total)
    assert jnp.allclose(l1loss, ref_l1, rtol=rtol, atol=atol), (shape, l1loss, ref_l1)
    assert jnp.allclose(bceloss, ref_bce, rtol=rtol, atol=atol), (shape, bceloss, ref_bce)


if __name__ == "__main__":
    key = jax.random.PRNGKey(0)
    k_small, k_med = jax.random.split(key, 2)

    # Small NCHW-shaped synthetic inputs (single block, single split).
    _check((2, 4, 16, 16), k_small, rtol=1e-5, atol=1e-6)

    # Medium case exercising the 2-way split, a clamped/skipped tail block,
    # and the ragged last-block mask (rows_pad % block_rows != 0).
    _check((2, 4, 256, 300), k_med, rtol=1e-4, atol=1e-5)

    print("KERNEL_OK")
</pallas_src>

<mosaic_0001>
module attributes {stable_mosaic.version = 11 : i64} {
  func.func @kernel(%arg0: i32, %arg1: i32, %arg2: memref<16x128xf32, #tpu.memory_space<vmem>>, %arg3: memref<16x128xf32, #tpu.memory_space<vmem>>, %arg4: memref<16x128xf32, #tpu.memory_space<vmem>>, %arg5: memref<16x128xf32, #tpu.memory_space<vmem>>, %arg6: memref<1x2xf32, #tpu.memory_space<smem>>, %arg7: memref<16x128xf32, #tpu.memory_space<vmem>>, %arg8: memref<16x128xf32, #tpu.memory_space<vmem>>) attributes {dimension_semantics = [#tpu.dimension_semantics<parallel>, #tpu.dimension_semantics<arbitrary>], iteration_bounds = array<i64: 1, 1>, scalar_prefetch = 0 : i64, scratch_operands = 2 : i64, tpu.core_type = #tpu.core_type<tc>, window_params = [{transform_indices = @transform_0, window_bounds = array<i64: 16, 128>}, {transform_indices = @transform_1, window_bounds = array<i64: 16, 128>}, {transform_indices = @transform_2, window_bounds = array<i64: 16, 128>}, {transform_indices = @transform_3, window_bounds = array<i64: 16, 128>}, {transform_indices = @transform_4, window_bounds = array<i64: 1, 2>}]} {
    %c1_i32 = arith.constant 1 : i32
    %0 = arith.muli %arg0, %c1_i32 : i32
    %1 = arith.addi %0, %arg1 : i32
    %c0_i32 = arith.constant 0 : i32
    %2 = arith.cmpi eq, %arg1, %c0_i32 : i32
    %3 = arith.extui %2 : i1 to i32
    %c0_i32_0 = arith.constant 0 : i32
    %4 = arith.cmpi ne, %3, %c0_i32_0 : i32
    scf.if %4 {
      %cst = arith.constant 0.000000e+00 : f32
      %11 = vector.broadcast %cst : f32 to vector<16x128xf32>
      %c0 = arith.constant 0 : index
      %c0_5 = arith.constant 0 : index
      %12 = vector.load %arg7[%c0, %c0_5] : memref<16x128xf32, #tpu.memory_space<vmem>>, vector<16x128xf32>
      tpu.vector_store %arg7[%c0, %c0_5], %11 {strides = array<i32>} : memref<16x128xf32, #tpu.memory_space<vmem>>, vector<16x128xf32>,
      %cst_6 = arith.constant 0.000000e+00 : f32
      %13 = vector.broadcast %cst_6 : f32 to vector<16x128xf32>
      %c0_7 = arith.constant 0 : index
      %c0_8 = arith.constant 0 : index
      %14 = vector.load %arg8[%c0_7, %c0_8] : memref<16x128xf32, #tpu.memory_space<vmem>>, vector<16x128xf32>
      tpu.vector_store %arg8[%c0_7, %c0_8], %13 {strides = array<i32>} : memref<16x128xf32, #tpu.memory_space<vmem>>, vector<16x128xf32>,
    } else {
    }
    %c1_i32_1 = arith.constant 1 : i32
    %5 = arith.cmpi slt, %1, %c1_i32_1 : i32
    %6 = arith.extui %5 : i1 to i32
    %c0_i32_2 = arith.constant 0 : i32
    %7 = arith.cmpi ne, %6, %c0_i32_2 : i32
    scf.if %7 {
      %c0 = arith.constant 0 : index
      %c0_5 = arith.constant 0 : index
      %11 = vector.load %arg2[%c0, %c0_5] : memref<16x128xf32, #tpu.memory_space<vmem>>, vector<16x128xf32>
      %c0_6 = arith.constant 0 : index
      %c0_7 = arith.constant 0 : index
      %12 = vector.load %arg3[%c0_6, %c0_7] : memref<16x128xf32, #tpu.memory_space<vmem>>, vector<16x128xf32>
      %c0_8 = arith.constant 0 : index
      %c0_9 = arith.constant 0 : index
      %13 = vector.load %arg4[%c0_8, %c0_9] : memref<16x128xf32, #tpu.memory_space<vmem>>, vector<16x128xf32>
      %c0_10 = arith.constant 0 : index
      %c0_11 = arith.constant 0 : index
      %14 = vector.load %arg5[%c0_10, %c0_11] : memref<16x128xf32, #tpu.memory_space<vmem>>, vector<16x128xf32>
      %15 = arith.subf %11, %13 : vector<16x128xf32>
      %16 = math.absf %15 : vector<16x128xf32>
      %17 = arith.mulf %14, %16 : vector<16x128xf32>
      %18 = math.log %12 : vector<16x128xf32>
      %cst = arith.constant -1.000000e+02 : f32
      %19 = vector.broadcast %cst : f32 to vector<16x128xf32>
      %20 = arith.maximumf %18, %19 : vector<16x128xf32>
      %cst_12 = arith.constant 1.000000e+00 : f32
      %21 = vector.broadcast %cst_12 : f32 to vector<16x128xf32>
      %22 = arith.subf %21, %12 : vector<16x128xf32>
      %23 = math.log %22 : vector<16x128xf32>
      %cst_13 = arith.constant -1.000000e+02 : f32
      %24 = vector.broadcast %cst_13 : f32 to vector<16x128xf32>
      %25 = arith.maximumf %23, %24 : vector<16x128xf32>
      %26 = arith.mulf %14, %20 : vector<16x128xf32>
      %cst_14 = arith.constant 1.000000e+00 : f32
      %27 = vector.broadcast %cst_14 : f32 to vector<16x128xf32>
      %28 = arith.subf %27, %14 : vector<16x128xf32>
      %29 = arith.mulf %28, %25 : vector<16x128xf32>
      %30 = arith.addf %26, %29 : vector<16x128xf32>
      %cst_15 = arith.constant 0.000000e+00 : f32
      %31 = vector.broadcast %cst_15 : f32 to vector<16x128xf32>
      %32 = arith.subf %31, %30 : vector<16x128xf32>
      %c0_16 = arith.constant 0 : index
      %c0_17 = arith.constant 0 : index
      %33 = vector.load %arg7[%c0_16, %c0_17] : memref<16x128xf32, #tpu.memory_space<vmem>>, vector<16x128xf32>
      %34 = arith.addf %33, %17 : vector<16x128xf32>
      %c0_18 = arith.constant 0 : index
      %c0_19 = arith.constant 0 : index
      %35 = vector.load %arg7[%c0_18, %c0_19] : memref<16x128xf32, #tpu.memory_space<vmem>>, vector<16x128xf32>
      tpu.vector_store %arg7[%c0_18, %c0_19], %34 {strides = array<i32>} : memref<16x128xf32, #tpu.memory_space<vmem>>, vector<16x128xf32>,
      %c0_20 = arith.constant 0 : index
      %c0_21 = arith.constant 0 : index
      %36 = vector.load %arg8[%c0_20, %c0_21] : memref<16x128xf32, #tpu.memory_space<vmem>>, vector<16x128xf32>
      %37 = arith.addf %36, %32 : vector<16x128xf32>
      %c0_22 = arith.constant 0 : index
      %c0_23 = arith.constant 0 : index
      %38 = vector.load %arg8[%c0_22, %c0_23] : memref<16x128xf32, #tpu.memory_space<vmem>>, vector<16x128xf32>
      tpu.vector_store %arg8[%c0_22, %c0_23], %37 {strides = array<i32>} : memref<16x128xf32, #tpu.memory_space<vmem>>, vector<16x128xf32>,
    } else {
    }
    %c0_i32_3 = arith.constant 0 : i32
    %8 = arith.cmpi eq, %arg1, %c0_i32_3 : i32
    %9 = arith.extui %8 : i1 to i32
    %c0_i32_4 = arith.constant 0 : i32
    %10 = arith.cmpi ne, %9, %c0_i32_4 : i32
    scf.if %10 {
      %c0 = arith.constant 0 : index
      %c0_5 = arith.constant 0 : index
      %11 = vector.load %arg7[%c0, %c0_5] : memref<16x128xf32, #tpu.memory_space<vmem>>, vector<16x128xf32>
      %12 = vector.shape_cast %11 : vector<16x128xf32> to vector<1x16x128xf32>
      %cst = arith.constant dense<0.000000e+00> : vector<1xf32>
      %13 = vector.multi_reduction <add>, %12, %cst [1, 2] : vector<1x16x128xf32> to vector<1xf32>
      %14 = vector.shape_cast %13 : vector<1xf32> to vector<1x1x1xf32>
      %15 = vector.extract %14[0, 0, 0] : f32 from vector<1x1x1xf32>
      %c0_6 = arith.constant 0 : index
      %c0_7 = arith.constant 0 : index
      %16 = memref.load %arg6[%c0_6, %c0_7] : memref<1x2xf32, #tpu.memory_space<smem>>
      memref.store %15, %arg6[%c0_6, %c0_7] : memref<1x2xf32, #tpu.memory_space<smem>>
      %c0_8 = arith.constant 0 : index
      %c0_9 = arith.constant 0 : index
      %17 = vector.load %arg8[%c0_8, %c0_9] : memref<16x128xf32, #tpu.memory_space<vmem>>, vector<16x128xf32>
      %18 = vector.shape_cast %17 : vector<16x128xf32> to vector<1x16x128xf32>
      %cst_10 = arith.constant dense<0.000000e+00> : vector<1xf32>
      %19 = vector.multi_reduction <add>, %18, %cst_10 [1, 2] : vector<1x16x128xf32> to vector<1xf32>
      %20 = vector.shape_cast %19 : vector<1xf32> to vector<1x1x1xf32>
      %21 = vector.extract %20[0, 0, 0] : f32 from vector<1x1x1xf32>
      %c0_11 = arith.constant 0 : index
      %c1 = arith.constant 1 : index
      %22 = memref.load %arg6[%c0_11, %c1] : memref<1x2xf32, #tpu.memory_space<smem>>
      memref.store %21, %arg6[%c0_11, %c1] : memref<1x2xf32, #tpu.memory_space<smem>>
    } else {
    }
    return
  }
  func.func @transform_0(%arg0: i32, %arg1: i32) -> (i32, i32) {
    %c1_i32 = arith.constant 1 : i32
    %0 = arith.muli %arg0, %c1_i32 : i32
    %1 = arith.addi %0, %arg1 : i32
    %c0_i32 = arith.constant 0 : i32
    %2 = arith.minsi %1, %c0_i32 : i32
    %c0_i32_0 = arith.constant 0 : i32
    %c0_i32_1 = arith.constant 0 : i32
    return %2, %c0_i32_0 : i32, i32
  }
  func.func @transform_1(%arg0: i32, %arg1: i32) -> (i32, i32) {
    %c1_i32 = arith.constant 1 : i32
    %0 = arith.muli %arg0, %c1_i32 : i32
    %1 = arith.addi %0, %arg1 : i32
    %c0_i32 = arith.constant 0 : i32
    %2 = arith.minsi %1, %c0_i32 : i32
    %c0_i32_0 = arith.constant 0 : i32
    %c0_i32_1 = arith.constant 0 : i32
    return %2, %c0_i32_0 : i32, i32
  }
  func.func @transform_2(%arg0: i32, %arg1: i32) -> (i32, i32) {
    %c1_i32 = arith.constant 1 : i32
    %0 = arith.muli %arg0, %c1_i32 : i32
    %1 = arith.addi %0, %arg1 : i32
    %c0_i32 = arith.constant 0 : i32
    %2 = arith.minsi %1, %c0_i32 : i32
    %c0_i32_0 = arith.constant 0 : i32
    %c0_i32_1 = arith.constant 0 : i32
    return %2, %c0_i32_0 : i32, i32
  }
  func.func @transform_3(%arg0: i32, %arg1: i32) -> (i32, i32) {
    %c1_i32 = arith.constant 1 : i32
    %0 = arith.muli %arg0, %c1_i32 : i32
    %1 = arith.addi %0, %arg1 : i32
    %c0_i32 = arith.constant 0 : i32
    %2 = arith.minsi %1, %c0_i32 : i32
    %c0_i32_0 = arith.constant 0 : i32
    %c0_i32_1 = arith.constant 0 : i32
    return %2, %c0_i32_0 : i32, i32
  }
  func.func @transform_4(%arg0: i32, %arg1: i32) -> (i32, i32) {
    %c0_i32 = arith.constant 0 : i32
    %c0_i32_0 = arith.constant 0 : i32
    return %arg0, %c0_i32 : i32, i32
  }
}

</mosaic_0001>

<llo_original>
// kernel: l1_bce_loss.1
$region0: #{l1_bce_loss.1}
  #allocation0 [shape = 'u32[]', space=smem, size = 0x4, offset = 0x4, fixed_abs, tag = 'smem constant byte address 0x4 - core index']
  #allocation1 [shape = 'u32[144,128]{1,0:T(1,128)}', space=vmem, size = 0x12000, scoped, tag = 'internal scratch']
  #allocation2 [shape = 'f32[16,128]{1,0:T(8,128)}', space=vmem, size = 0x2000, scoped, tag = 'scratch operand']
  #allocation3 [shape = 'f32[16,128]{1,0:T(8,128)}', space=vmem, size = 0x2000, scoped, tag = 'scratch operand']
  %s0 = inlined_call_operand.vmem [shape: f32[16,128], index: 0, kind: input, shape index: {}]
  %s1 = inlined_call_operand.vmem [shape: f32[16,128], index: 1, kind: input, shape index: {}]
  %s2 = inlined_call_operand.vmem [shape: f32[16,128], index: 2, kind: input, shape index: {}]
  %s3 = inlined_call_operand.vmem [shape: f32[16,128], index: 3, kind: input, shape index: {}]
  %s4 = inlined_call_operand.vmem [shape: f32[1,2], index: 4, kind: output, shape index: {}]
  %s5 = sld [smem:[#allocation0]]
  $region38: #{l1_bce_loss.1} parent=0
    _
  %s7 = ssub.s32 1, %s5
  %s8 = scalar_select 0, %s7, %s5
  $region1: #{l1_bce_loss.1} parent=0
    #allocation4 [shape = 'u8[512]{0}', space=smem, size = 0x200, scoped, tag = 'output window, operand 0, single buffered']
    #allocation5 [shape = 's32[1]{0}', space=sflag, size = 0x4, scoped, tag = 'scoped memory for l1_bce_loss.1']
    %9 = vsyncpa [#allocation5], 0
    // Predicated region
    $region2: #{l1_bce_loss.1} parent=1 // pred_check
      _
    $region3: #{l1_bce_loss.1} parent=1 // pred_check_branch
      %11 = sbr.rel (0) target = $region5
    $region4: #{l1_bce_loss.1} parent=1 // pred_region
      %s12 = sadd.s32 0, 0
      %p13 = scmp.lt.s32.totalorder %s12, 0
      %s14 = scalar_select %p13, %s12, 0
      %s15 = smul.u32 2, %s14
      %p16 = scmp.lt.s32.totalorder %s15, 1
      %s17 = scalar_select %p16, %s15, 1
      %s18 = smul.addr %s17, 8
      %s19 = scalar_lea.vmem %s0, %s18
      %s20 = sadd.s32 0, 0
      %p21 = scmp.lt.s32.totalorder %s20, 0
      %s22 = scalar_select %p21, %s20, 0
      %s23 = smul.u32 2, %s22
    $region5: #{l1_bce_loss.1} parent=1 // pred_fallthru
      _
    // Predicated region
    $region6: #{l1_bce_loss.1} parent=1 // pred_check
      _
    $region7: #{l1_bce_loss.1} parent=1 // pred_check_branch
      %25 = sbr.rel (0) target = $region9
    $region8: #{l1_bce_loss.1} parent=1 // pred_region
      %s26 = sadd.s32 0, 0
      %p27 = scmp.lt.s32.totalorder %s26, 0
      %s28 = scalar_select %p27, %s26, 0
      %s29 = smul.u32 2, %s28
      %p30 = scmp.lt.s32.totalorder %s29, 1
      %s31 = scalar_select %p30, %s29, 1
      %s32 = smul.addr %s31, 8
      %s33 = scalar_lea.vmem %s1, %s32
      %s34 = sadd.s32 0, 0
      %p35 = scmp.lt.s32.totalorder %s34, 0
      %s36 = scalar_select %p35, %s34, 0
      %s37 = smul.u32 2, %s36
    $region9: #{l1_bce_loss.1} parent=1 // pred_fallthru
      _
    // Predicated region
    $region10: #{l1_bce_loss.1} parent=1 // pred_check
      _
    $region11: #{l1_bce_loss.1} parent=1 // pred_check_branch
      %39 = sbr.rel (0) target = $region13
    $region12: #{l1_bce_loss.1} parent=1 // pred_region
      %s40 = sadd.s32 0, 0
      %p41 = scmp.lt.s32.totalorder %s40, 0
      %s42 = scalar_select %p41, %s40, 0
      %s43 = smul.u32 2, %s42
      %p44 = scmp.lt.s32.totalorder %s43, 1
      %s45 = scalar_select %p44, %s43, 1
      %s46 = smul.addr %s45, 8
      %s47 = scalar_lea.vmem %s2, %s46
      %s48 = sadd.s32 0, 0
      %p49 = scmp.lt.s32.totalorder %s48, 0
      %s50 = scalar_select %p49, %s48, 0
      %s51 = smul.u32 2, %s50
    $region13: #{l1_bce_loss.1} parent=1 // pred_fallthru
      _
    // Predicated region
    $region14: #{l1_bce_loss.1} parent=1 // pred_check
      _
    $region15: #{l1_bce_loss.1} parent=1 // pred_check_branch
      %53 = sbr.rel (0) target = $region17
    $region16: #{l1_bce_loss.1} parent=1 // pred_region
      %s54 = sadd.s32 0, 0
      %p55 = scmp.lt.s32.totalorder %s54, 0
      %s56 = scalar_select %p55, %s54, 0
      %s57 = smul.u32 2, %s56
      %p58 = scmp.lt.s32.totalorder %s57, 1
      %s59 = scalar_select %p58, %s57, 1
      %s60 = smul.addr %s59, 8
      %s61 = scalar_lea.vmem %s3, %s60
      %s62 = sadd.s32 0, 0
      %p63 = scmp.lt.s32.totalorder %s62, 0
      %s64 = scalar_select %p63, %s62, 0
      %s65 = smul.u32 2, %s64
    $region17: #{l1_bce_loss.1} parent=1 // pred_fallthru
      _
    %s66 = sadd.s32 0, 0
    %p67 = scmp.lt.s32.totalorder %s66, 0
    %s68 = scalar_select %p67, %s66, 0
    %s69 = smul.u32 2, %s68
    %p70 = scmp.lt.s32.totalorder %s69, 1
    %s71 = scalar_select %p70, %s69, 1
    %s72 = smul.addr %s71, 8
    %s73 = scalar_lea.vmem %s0, %s72
    %s74 = sadd.s32 0, 0
    %p75 = scmp.lt.s32.totalorder %s74, 0
    %s76 = scalar_select %p75, %s74, 0
    %s77 = smul.u32 2, %s76
    %p78 = scmp.lt.s32.totalorder %s77, 1
    %s79 = scalar_select %p78, %s77, 1
    %s80 = smul.addr %s79, 8
    %s81 = scalar_lea.vmem %s1, %s80
    %s82 = sadd.s32 0, 0
    %p83 = scmp.lt.s32.totalorder %s82, 0
    %s84 = scalar_select %p83, %s82, 0
    %s85 = smul.u32 2, %s84
    %p86 = scmp.lt.s32.totalorder %s85, 1
    %s87 = scalar_select %p86, %s85, 1
    %s88 = smul.addr %s87, 8
    %s89 = scalar_lea.vmem %s2, %s88
    %s90 = sadd.s32 0, 0
    %p91 = scmp.lt.s32.totalorder %s90, 0
    %s92 = scalar_select %p91, %s90, 0
    %s93 = smul.u32 2, %s92
    %p94 = scmp.lt.s32.totalorder %s93, 1
    %s95 = scalar_select %p94, %s93, 1
    %s96 = smul.addr %s95, 8
    %s97 = scalar_lea.vmem %s3, %s96
    %s98 = sadd.s32 0, 0
    %p99 = scmp.lt.s32.totalorder %s98, 0
    %s100 = scalar_select %p99, %s98, 0
    %s101 = smul.u32 2, %s100
    %p102 = scmp.lt.s32.totalorder %s101, 1
    %s103 = scalar_select %p102, %s101, 1
    %s104 = smul.addr %s103, 8
    %s105 = scalar_lea.vmem %s0, %s104
    %s106 = sadd.s32 0, 0
    %p107 = scmp.lt.s32.totalorder %s106, 0
    %s108 = scalar_select %p107, %s106, 0
    %s109 = smul.u32 2, %s108
    %s110 = sadd.s32 0, 0
    %p111 = scmp.lt.s32.totalorder %s110, 0
    %s112 = scalar_select %p111, %s110, 0
    %s113 = smul.u32 2, %s112
    %p114 = scmp.lt.s32.totalorder %s113, 1
    %s115 = scalar_select %p114, %s113, 1
    %s116 = smul.addr %s115, 8
    %s117 = scalar_lea.vmem %s1, %s116
    %s118 = sadd.s32 0, 0
    %p119 = scmp.lt.s32.totalorder %s118, 0
    %s120 = scalar_select %p119, %s118, 0
    %s121 = smul.u32 2, %s120
    %s122 = sadd.s32 0, 0
    %p123 = scmp.lt.s32.totalorder %s122, 0
    %s124 = scalar_select %p123, %s122, 0
    %s125 = smul.u32 2, %s124
    %p126 = scmp.lt.s32.totalorder %s125, 1
    %s127 = scalar_select %p126, %s125, 1
    %s128 = smul.addr %s127, 8
    %s129 = scalar_lea.vmem %s2, %s128
    %s130 = sadd.s32 0, 0
    %p131 = scmp.lt.s32.totalorder %s130, 0
    %s132 = scalar_select %p131, %s130, 0
    %s133 = smul.u32 2, %s132
    %s134 = sadd.s32 0, 0
    %p135 = scmp.lt.s32.totalorder %s134, 0
    %s136 = scalar_select %p135, %s134, 0
    %s137 = smul.u32 2, %s136
    %p138 = scmp.lt.s32.totalorder %s137, 1
    %s139 = scalar_select %p138, %s137, 1
    %s140 = smul.addr %s139, 8
    %s141 = scalar_lea.vmem %s3, %s140
    %s142 = sadd.s32 0, 0
    %p143 = scmp.lt.s32.totalorder %s142, 0
    %s144 = scalar_select %p143, %s142, 0
    %s145 = smul.u32 2, %s144
    %s146 = sadd.s32 0, 0
    %p147 = scmp.eq.s32.totalorder 0, 0
    // Predicated region
    $region18: #{l1_bce_loss.1} parent=1 // pred_check
      %p148 = pneg %p147
    $region19: #{l1_bce_loss.1} parent=1 // pred_check_branch
      %150 = sbr.rel (%p148) target = $region21
    $region20: #{l1_bce_loss.1} parent=1 // pred_region
      %151 = vst [vmem:[#allocation2] sm:$0xff] 0.0
      %152 = vst [vmem:[#allocation2 + $0x8] sm:$0xff] 0.0
      %153 = vst [vmem:[#allocation3] sm:$0xff] 0.0
      %154 = vst [vmem:[#allocation3 + $0x8] sm:$0xff] 0.0
    $region21: #{l1_bce_loss.1} parent=1 // pred_fallthru
      _
    %p155 = scmp.lt.s32.totalorder %s146, 1
    // Predicated region
    $region22: #{l1_bce_loss.1} parent=1 // pred_check
      %p156 = pneg %p155
    $region23: #{l1_bce_loss.1} parent=1 // pred_check_branch
      %158 = sbr.rel (%p156) target = $region25
    $region24: #{l1_bce_loss.1} parent=1 // pred_region
      %v159 = vld [vmem:[%s105] sm:$0xff]
      %v160 = vld [vmem:[%s105 + $0x8] sm:$0xff]
      %v161 = vld [vmem:[%s117] sm:$0xff]
      %v162 = vld [vmem:[%s117 + $0x8] sm:$0xff]
      %v163 = vld [vmem:[%s129] sm:$0xff]
      %v164 = vld [vmem:[%s129 + $0x8] sm:$0xff]
      %v165 = vld [vmem:[%s141] sm:$0xff]
      %v166 = vld [vmem:[%s141 + $0x8] sm:$0xff]
      %v167 = vsub.f32 %v159, %v163
      %v168 = vsub.f32 %v160, %v164
      %v169 = vand.u32 2147483647, %v167
      %v170 = vand.u32 2147483647, %v168
      %v171 = vmul.f32 %v165, %v169
      %v172 = vmul.f32 %v166, %v170
      %v173 = vlog2.pop %v161
      %v174 = vmul.f32 %v173, 0.6931472
      %v175 = vlog2.pop %v162
      %v176 = vmul.f32 %v175, 0.6931472
      %v177 = vmax.f32 %v174, -100.0
      %v178 = vmax.f32 %v176, -100.0
      %v179 = vsub.f32 1.0, %v161
      %v180 = vsub.f32 1.0, %v162
      %v181 = vlog2.pop %v179
      %v182 = vmul.f32 %v181, 0.6931472
      %v183 = vlog2.pop %v180
      %v184 = vmul.f32 %v183, 0.6931472
      %v185 = vmax.f32 %v182, -100.0
      %v186 = vmax.f32 %v184, -100.0
      %v187 = vmul.f32 %v165, %v177
      %v188 = vmul.f32 %v166, %v178
      %v189 = vsub.f32 1.0, %v165
      %v190 = vsub.f32 1.0, %v166
      %v191 = vmul.f32 %v189, %v185
      %v192 = vmul.f32 %v190, %v186
      %v193 = vadd.f32 %v187, %v191
      %v194 = vadd.f32 %v188, %v192
      %v195 = vsub.f32 0.0, %v193
      %v196 = vsub.f32 0.0, %v194
      %v197 = vld [vmem:[#allocation2] sm:$0xff]
      %v198 = vld [vmem:[#allocation2 + $0x8] sm:$0xff]
      %v199 = vadd.f32 %v197, %v171
      %v200 = vadd.f32 %v198, %v172
      %201 = vst [vmem:[#allocation2] sm:$0xff] %v199
      %202 = vst [vmem:[#allocation2 + $0x8] sm:$0xff] %v200
      %v203 = vld [vmem:[#allocation3] sm:$0xff]
      %v204 = vld [vmem:[#allocation3 + $0x8] sm:$0xff]
      %v205 = vadd.f32 %v203, %v195
      %v206 = vadd.f32 %v204, %v196
      %207 = vst [vmem:[#allocation3] sm:$0xff] %v205
      %208 = vst [vmem:[#allocation3 + $0x8] sm:$0xff] %v206
    $region25: #{l1_bce_loss.1} parent=1 // pred_fallthru
      _
    // Predicated region
    $region26: #{l1_bce_loss.1} parent=1 // pred_check
      %p209 = pneg %p147
    $region27: #{l1_bce_loss.1} parent=1 // pred_check_branch
      %211 = sbr.rel (%p209) target = $region29
    $region28: #{l1_bce_loss.1} parent=1 // pred_region
      %v212 = vld [vmem:[#allocation2] sm:$0xff]
      %v213 = vld [vmem:[#allocation2 + $0x8] sm:$0xff]
      %v214 = vadd.f32 %v212, %v213
      %215 = vadd.xlane.f32.xlu0 %v214
      %v216 = vpop.xlane.xlu0 %215
      %v217 = vrot.slane %v216, 4
      %v218 = vadd.f32 %v216, %v217
      %v219 = vrot.slane %v218, 2
      %v220 = vadd.f32 %v218, %v219
      %v221 = vrot.slane %v220, 1
      %v222 = vadd.f32 %v220, %v221
      %s223 = vtos %v222
      %s224 = scalar_lea.smem [#allocation4], 0
      %225 = sst [smem:[%s224]] %s223
      %v226 = vld [vmem:[#allocation3] sm:$0xff]
      %v227 = vld [vmem:[#allocation3 + $0x8] sm:$0xff]
      %v228 = vadd.f32 %v226, %v227
      %229 = vadd.xlane.f32.xlu0 %v228
      %v230 = vpop.xlane.xlu0 %229
      %v231 = vrot.slane %v230, 4
      %v232 = vadd.f32 %v230, %v231
      %v233 = vrot.slane %v232, 2
      %v234 = vadd.f32 %v232, %v233
      %v235 = vrot.slane %v234, 1
      %v236 = vadd.f32 %v234, %v235
      %s237 = vtos %v236
      %s238 = scalar_lea.smem [#allocation4], 1
      %239 = sst [smem:[%s238]] %s237
    $region29: #{l1_bce_loss.1} parent=1 // pred_fallthru
      _
    // Predicated region
    $region30: #{l1_bce_loss.1} parent=1 // pred_check
      _
    $region31: #{l1_bce_loss.1} parent=1 // pred_check_branch
      %241 = sbr.rel (0) target = $region33
    $region32: #{l1_bce_loss.1} parent=1 // pred_region
      %s243 = ssub.s32 16, 16
      %244 = vsyncadd [#allocation5], %s243
      %s246 = sshll.u32 %s4, 4
      %s247 = int_to_ptr.vmem [resolvable:$true] %s246
      %249 = dma.smem_to_vmem [#allocation4], 16, %s247, [#allocation5]
    $region33: #{l1_bce_loss.1} parent=1 // pred_fallthru
      _
    // Predicated region
    $region34: #{l1_bce_loss.1} parent=1 // pred_check
      _
    $region35: #{l1_bce_loss.1} parent=1 // pred_check_branch
      %251 = sbr.rel (0) target = $region37
    $region36: #{l1_bce_loss.1} parent=1 // pred_region
      %252 = dma.done [#allocation5], 16
    $region37: #{l1_bce_loss.1} parent=1 // pred_fallthru
      _
    %253 = sfence
    %254 = vsyncpa [#allocation5], 1

</llo_original>
